<compile_context>
chip_gen: v5e
topology: v5e:2x2
jax: 0.10.0
libtpu: 0.0.40
codegen_flags: <defaults>
</compile_context>

<pallas_src>
import functools

import jax
import jax.numpy as jnp
from jax import lax
from jax.experimental import pallas as pl
from jax.experimental.pallas import tpu as pltpu


def _ce_kernel(logits_ref, tgt_ref, out_ref, acc_ref, *,
               n_valid: int, tile_m: int, use_mxu_reduce: bool):
    """One (tile_m, C) row tile: accumulate per-row CE losses into acc_ref."""
    p = pl.program_id(0)            # row chunk (parallel)
    i = pl.program_id(1)            # row tile within chunk (arbitrary / sequential)
    n_inner = pl.num_programs(1)

    @pl.when(i == 0)
    def _init():
        acc_ref[...] = jnp.zeros_like(acc_ref)

    x = logits_ref[...]             # (tile_m, C) incoming dtype (bf16 stays bf16)
    y = tgt_ref[...]                # (tile_m, 1) int32
    C = x.shape[-1]

    # ---- Pass 1 (native dtype): row max + one-hot pick of the target logit.
    cls = lax.broadcasted_iota(jnp.int32, x.shape, 1)           # (tile_m, C)
    m = jnp.max(x, axis=-1, keepdims=True)                      # (tile_m, 1)
    picked_sel = jnp.where(cls == y, x, jnp.zeros_like(x))      # one nonzero per row

    # ---- Pass 2 (f32): shifted exponentials for the logsumexp term.
    xs = x.astype(jnp.float32) - m.astype(jnp.float32)          # (tile_m, C) f32
    e = jnp.exp(xs)

    if use_mxu_reduce:
        # Offload the C-axis add trees to the otherwise-idle MXU.
        ones_n = jnp.ones((C, 1), dtype=x.dtype)
        ones_f = jnp.ones((C, 1), dtype=jnp.float32)
        picked = jnp.dot(picked_sel, ones_n, preferred_element_type=jnp.float32)
        sum_e = jnp.dot(e, ones_f, preferred_element_type=jnp.float32)
    else:
        picked = jnp.sum(picked_sel.astype(jnp.float32), axis=-1, keepdims=True)
        sum_e = jnp.sum(e, axis=-1, keepdims=True)

    # loss = logsumexp(x) - x[y] = m + log(sum exp(x - m)) - x[y]
    losses = m.astype(jnp.float32) + jnp.log(sum_e) - picked    # (tile_m, 1)

    # Drop contributions from rows past N (partial / repeated tail blocks).
    row0 = (p * n_inner + i) * tile_m
    rows = row0 + lax.broadcasted_iota(jnp.int32, (tile_m, 1), 0)
    losses = jnp.where(rows < n_valid, losses, 0.0)

    acc_ref[...] += losses                                      # cheap VPU add

    @pl.when(i == n_inner - 1)
    def _finalize():
        partial = jnp.sum(acc_ref[...])                         # one reduce per chunk
        # Lane-dense, unmasked (1, 8, 128) store; wrapper reads [p, 0, 0].
        out_ref[...] = jnp.full(out_ref.shape, partial, jnp.float32)


def cross_entropy_pallas(s_out: jax.Array, s: jax.Array, *,
                         tile_m: int | None = None,
                         num_chunks: int | None = None) -> jax.Array:
    """Mean cross-entropy over all (B*T) rows, computed in a Pallas TPU kernel."""
    B, T, C = s_out.shape
    N = B * T

    # Keep incoming dtype on the DMA path (bf16 stays bf16); cast in-kernel.
    logits = s_out.reshape(N, C)
    targets = s.reshape(N, 1).astype(jnp.int32)
    itemsize = jnp.dtype(logits.dtype).itemsize

    # --- Generation-aware VMEM budgeting. ---
    try:
        vmem_cap = int(pltpu.get_tpu_info().vmem_capacity_bytes)
    except Exception:  # no TPU info available -> assume the smallest (v7x, 64 MiB)
        vmem_cap = 64 * 1024 * 1024
    vmem_limit = vmem_cap * 3 // 4          # 48 MiB on v7x, 96 MiB on v5e/v6e

    if tile_m is None:
        # Per-row working set: double-buffered DMA block in the incoming dtype,
        # one native-dtype select, plus ~2 live f32 (tile_m, C) temporaries
        # (shifted logits / exp) inside the kernel.
        per_row = C * (3 * itemsize + 2 * 4) + 64
        tile_m = (vmem_limit * 7 // 10) // per_row
        tile_m = int(min(4096, max(8, tile_m)))
    n_pad8 = ((N + 7) // 8) * 8
    tile_m = min(tile_m, max(8, n_pad8))
    tile_m = max(8, (tile_m // 8) * 8)      # sublane multiple
    # TODO(synk): for vocabularies so large that even one 8-row tile exceeds the
    # VMEM budget, add an inner C-blocked online-logsumexp loop (not needed here).

    tiles_total = -(-N // tile_m)

    # --- Chunking: 2 equal chunks on v7x (2 TCs), 1 chunk on single-TC parts. ---
    if num_chunks is None:
        kind = jax.devices()[0].device_kind.lower()
        num_chunks = 2 if ("v7" in kind or "7x" in kind) else 1
    num_chunks = max(1, min(num_chunks, tiles_total))
    tiles_per_chunk = -(-tiles_total // num_chunks)

    # Tail grid steps whose tile index would run past the data are clamped to the
    # last real tile (re-read, zero-masked) -> no wrapper-side padding / HBM copy.
    def row_block(p, i):
        t = p * tiles_per_chunk + i
        return (jnp.minimum(t, tiles_total - 1), 0)

    kernel = functools.partial(_ce_kernel, n_valid=N, tile_m=tile_m,
                               use_mxu_reduce=(C >= 128))

    partials = pl.pallas_call(
        kernel,
        out_shape=jax.ShapeDtypeStruct((num_chunks, 8, 128), jnp.float32),
        grid_spec=pltpu.PrefetchScalarGridSpec(
            num_scalar_prefetch=0,
            grid=(num_chunks, tiles_per_chunk),
            in_specs=[
                pl.BlockSpec((tile_m, C), row_block),
                pl.BlockSpec((tile_m, 1), row_block),
            ],
            out_specs=pl.BlockSpec((1, 8, 128), lambda p, i: (p, 0, 0)),
            scratch_shapes=[pltpu.VMEM((tile_m, 1), jnp.float32)],
        ),
        compiler_params=pltpu.CompilerParams(
            dimension_semantics=("parallel", "arbitrary"),
            vmem_limit_bytes=int(vmem_limit),
        ),
    )(logits, targets)

    # Per-chunk partial sums -> mean over valid rows (reduced outside the kernel
    # so parallel chunks never race on a shared accumulator).  For N >> 1e7 rows
    # a pairwise/compensated sum of the partials could be used here.
    return jnp.sum(partials[:, 0, 0]) / jnp.float32(N)


def cross_entropy_ref(s_out, s):
    C = s_out.shape[-1]
    logits = s_out.reshape(-1, C).astype(jnp.float32)
    labels = s.reshape(-1)
    logz = jax.scipy.special.logsumexp(logits, axis=-1)
    picked = jnp.take_along_axis(logits, labels[:, None], axis=-1)[:, 0]
    return jnp.mean(logz - picked)


if __name__ == "__main__":
    key = jax.random.PRNGKey(0)
    k1, k2 = jax.random.split(key)

    B, T, C = 2, 8, 32           # s_out: (2, 8, 32) logits, s: (2, 8) class ids
    s_out = jax.random.normal(k1, (B, T, C), dtype=jnp.float32)
    s = jax.random.randint(k2, (B, T), 0, C, dtype=jnp.int32)

    loss = cross_entropy_pallas(s_out, s)
    loss = jax.block_until_ready(loss)

    ref = cross_entropy_ref(s_out, s)
    assert jnp.allclose(loss, ref, atol=1e-5, rtol=1e-5), (loss, ref)
    print("KERNEL_OK")
</pallas_src>

<mosaic_0001>
module attributes {stable_mosaic.version = 11 : i64} {
  func.func @_ce_kernel(%arg0: i32, %arg1: i32, %arg2: memref<16x32xf32, #tpu.memory_space<vmem>>, %arg3: memref<16x1xi32, #tpu.memory_space<vmem>>, %arg4: memref<1x8x128xf32, #tpu.memory_space<vmem>>, %arg5: memref<16x1xf32, #tpu.memory_space<vmem>>) attributes {dimension_semantics = [#tpu.dimension_semantics<parallel>, #tpu.dimension_semantics<arbitrary>], iteration_bounds = array<i64: 1, 1>, scalar_prefetch = 0 : i64, scratch_operands = 1 : i64, tpu.core_type = #tpu.core_type<tc>, window_params = [{transform_indices = @transform_0, window_bounds = array<i64: 16, 32>}, {transform_indices = @transform_1, window_bounds = array<i64: 16, 1>}, {transform_indices = @transform_2, window_bounds = array<i64: 1, 8, 128>}]} {
    %c0_i32 = arith.constant 0 : i32
    %0 = arith.cmpi eq, %arg1, %c0_i32 : i32
    %1 = arith.extui %0 : i1 to i32
    %c0_i32_0 = arith.constant 0 : i32
    %2 = arith.cmpi ne, %1, %c0_i32_0 : i32
    scf.if %2 {
      %cst_15 = arith.constant 0.000000e+00 : f32
      %38 = vector.broadcast %cst_15 : f32 to vector<16x1xf32>
      %c0_16 = arith.constant 0 : index
      %c0_17 = arith.constant 0 : index
      %39 = vector.load %arg5[%c0_16, %c0_17] : memref<16x1xf32, #tpu.memory_space<vmem>>, vector<16x1xf32>
      tpu.vector_store %arg5[%c0_16, %c0_17], %38 {strides = array<i32>} : memref<16x1xf32, #tpu.memory_space<vmem>>, vector<16x1xf32>,
    } else {
    }
    %c0 = arith.constant 0 : index
    %c0_1 = arith.constant 0 : index
    %3 = vector.load %arg2[%c0, %c0_1] : memref<16x32xf32, #tpu.memory_space<vmem>>, vector<16x32xf32>
    %c0_2 = arith.constant 0 : index
    %c0_3 = arith.constant 0 : index
    %4 = vector.load %arg3[%c0_2, %c0_3] : memref<16x1xi32, #tpu.memory_space<vmem>>, vector<16x1xi32>
    %5 = tpu.iota {dimensions = array<i32: 1>} : vector<16x32xi32>
    %cst = arith.constant dense<0xFF800000> : vector<16xf32>
    %6 = vector.multi_reduction <maximumf>, %3, %cst [1] : vector<16x32xf32> to vector<16xf32>
    %7 = vector.shape_cast %6 : vector<16xf32> to vector<16x1xf32>
    %8 = vector.broadcast %4 : vector<16x1xi32> to vector<16x32xi32>
    %9 = arith.cmpi eq, %5, %8 : vector<16x32xi32>
    %cst_4 = arith.constant 0.000000e+00 : f32
    %10 = vector.broadcast %cst_4 : f32 to vector<16x32xf32>
    %11 = arith.select %9, %3, %10 : vector<16x32xi1>, vector<16x32xf32>
    %12 = vector.broadcast %7 : vector<16x1xf32> to vector<16x32xf32>
    %13 = arith.subf %3, %12 : vector<16x32xf32>
    %14 = math.exp %13 : vector<16x32xf32>
    %cst_5 = arith.constant dense<0.000000e+00> : vector<16xf32>
    %15 = vector.multi_reduction <add>, %11, %cst_5 [1] : vector<16x32xf32> to vector<16xf32>
    %16 = vector.shape_cast %15 : vector<16xf32> to vector<16x1xf32>
    %cst_6 = arith.constant dense<0.000000e+00> : vector<16xf32>
    %17 = vector.multi_reduction <add>, %14, %cst_6 [1] : vector<16x32xf32> to vector<16xf32>
    %18 = vector.shape_cast %17 : vector<16xf32> to vector<16x1xf32>
    %19 = math.log %18 : vector<16x1xf32>
    %20 = arith.addf %7, %19 : vector<16x1xf32>
    %21 = arith.subf %20, %16 : vector<16x1xf32>
    %c1_i32 = arith.constant 1 : i32
    %22 = arith.muli %arg0, %c1_i32 : i32
    %23 = arith.addi %22, %arg1 : i32
    %c16_i32 = arith.constant 16 : i32
    %24 = arith.muli %23, %c16_i32 : i32
    %25 = tpu.iota {dimensions = array<i32: 0>} : vector<16x1xi32>
    %26 = vector.broadcast %24 : i32 to vector<16x1xi32>
    %27 = arith.addi %26, %25 : vector<16x1xi32>
    %c16_i32_7 = arith.constant 16 : i32
    %28 = vector.broadcast %c16_i32_7 : i32 to vector<16x1xi32>
    %29 = arith.cmpi slt, %27, %28 : vector<16x1xi32>
    %cst_8 = arith.constant 0.000000e+00 : f32
    %30 = vector.broadcast %cst_8 : f32 to vector<16x1xf32>
    %31 = arith.select %29, %21, %30 : vector<16x1xi1>, vector<16x1xf32>
    %c0_9 = arith.constant 0 : index
    %c0_10 = arith.constant 0 : index
    %32 = vector.load %arg5[%c0_9, %c0_10] : memref<16x1xf32, #tpu.memory_space<vmem>>, vector<16x1xf32>
    %33 = arith.addf %32, %31 : vector<16x1xf32>
    %c0_11 = arith.constant 0 : index
    %c0_12 = arith.constant 0 : index
    %34 = vector.load %arg5[%c0_11, %c0_12] : memref<16x1xf32, #tpu.memory_space<vmem>>, vector<16x1xf32>
    tpu.vector_store %arg5[%c0_11, %c0_12], %33 {strides = array<i32>} : memref<16x1xf32, #tpu.memory_space<vmem>>, vector<16x1xf32>,
    %c0_i32_13 = arith.constant 0 : i32
    %35 = arith.cmpi eq, %arg1, %c0_i32_13 : i32
    %36 = arith.extui %35 : i1 to i32
    %c0_i32_14 = arith.constant 0 : i32
    %37 = arith.cmpi ne, %36, %c0_i32_14 : i32
    scf.if %37 {
      %c0_15 = arith.constant 0 : index
      %c0_16 = arith.constant 0 : index
      %38 = vector.load %arg5[%c0_15, %c0_16] : memref<16x1xf32, #tpu.memory_space<vmem>>, vector<16x1xf32>
      %39 = vector.shape_cast %38 : vector<16x1xf32> to vector<1x16x1xf32>
      %cst_17 = arith.constant dense<0.000000e+00> : vector<1xf32>
      %40 = vector.multi_reduction <add>, %39, %cst_17 [1, 2] : vector<1x16x1xf32> to vector<1xf32>
      %41 = vector.shape_cast %40 : vector<1xf32> to vector<1x1x1xf32>
      %42 = vector.extract %41[0, 0, 0] : f32 from vector<1x1x1xf32>
      %43 = vector.broadcast %42 : f32 to vector<1x8x128xf32>
      %c0_18 = arith.constant 0 : index
      %c0_19 = arith.constant 0 : index
      %c0_20 = arith.constant 0 : index
      %44 = vector.load %arg4[%c0_18, %c0_19, %c0_20] : memref<1x8x128xf32, #tpu.memory_space<vmem>>, vector<1x8x128xf32>
      tpu.vector_store %arg4[%c0_18, %c0_19, %c0_20], %43 {strides = array<i32>} : memref<1x8x128xf32, #tpu.memory_space<vmem>>, vector<1x8x128xf32>,
    } else {
    }
    return
  }
  func.func @transform_0(%arg0: i32, %arg1: i32) -> (i32, i32) {
    %c1_i32 = arith.constant 1 : i32
    %0 = arith.muli %arg0, %c1_i32 : i32
    %1 = arith.addi %0, %arg1 : i32
    %c0_i32 = arith.constant 0 : i32
    %2 = arith.minsi %1, %c0_i32 : i32
    %c0_i32_0 = arith.constant 0 : i32
    %c0_i32_1 = arith.constant 0 : i32
    return %2, %c0_i32_0 : i32, i32
  }
  func.func @transform_1(%arg0: i32, %arg1: i32) -> (i32, i32) {
    %c1_i32 = arith.constant 1 : i32
    %0 = arith.muli %arg0, %c1_i32 : i32
    %1 = arith.addi %0, %arg1 : i32
    %c0_i32 = arith.constant 0 : i32
    %2 = arith.minsi %1, %c0_i32 : i32
    %c0_i32_0 = arith.constant 0 : i32
    %c0_i32_1 = arith.constant 0 : i32
    return %2, %c0_i32_0 : i32, i32
  }
  func.func @transform_2(%arg0: i32, %arg1: i32) -> (i32, i32, i32) {
    %c0_i32 = arith.constant 0 : i32
    %c0_i32_0 = arith.constant 0 : i32
    %c0_i32_1 = arith.constant 0 : i32
    return %arg0, %c0_i32, %c0_i32_0 : i32, i32, i32
  }
}

</mosaic_0001>

<llo_original>
// kernel: tpu_custom_call.1
$region0: #{tpu_custom_call.1}
  #allocation0 [shape = 'u32[]', space=smem, size = 0x4, offset = 0x4, fixed_abs, tag = 'smem constant byte address 0x4 - core index']
  #allocation1 [shape = 'u32[72,128]{1,0:T(1,128)}', space=vmem, size = 0x9000, scoped, tag = 'internal scratch']
  #allocation2 [shape = 'f32[16,1]{1,0:T(8,128)}', space=vmem, size = 0x2000, scoped, tag = 'scratch operand']
  %s0 = inlined_call_operand.vmem [shape: f32[16,32], index: 0, kind: input, shape index: {}]
  %s1 = inlined_call_operand.vmem [shape: s32[16,1], index: 1, kind: input, shape index: {}]
  %s2 = inlined_call_operand.hbm [shape: f32[1,8,128], index: 2, kind: output, shape index: {}]
  %s3 = sld [smem:[#allocation0]]
  $region26: #{tpu_custom_call.1} parent=0
    _
  %s5 = ssub.s32 1, %s3
  %s6 = scalar_select 0, %s5, %s3
  $region1: #{tpu_custom_call.1} parent=0
    #allocation3 [shape = 'u8[4096]{0}', space=vmem, size = 0x1000, scoped, tag = 'output window, operand 0, single buffered']
    #allocation4 [shape = 's32[1]{0}', space=sflag, size = 0x4, scoped, tag = 'scoped memory for tpu_custom_call.1']
    %7 = vsyncpa [#allocation4], 0
    // Predicated region
    $region2: #{tpu_custom_call.1} parent=1 // pred_check
      _
    $region3: #{tpu_custom_call.1} parent=1 // pred_check_branch
      %9 = sbr.rel (0) target = $region5
    $region4: #{tpu_custom_call.1} parent=1 // pred_region
      %s10 = sadd.s32 0, 0
      %p11 = scmp.lt.s32.totalorder %s10, 0
      %s12 = scalar_select %p11, %s10, 0
      %s13 = smul.u32 2, %s12
      %p14 = scmp.lt.s32.totalorder %s13, 1
      %s15 = scalar_select %p14, %s13, 1
      %s16 = smul.addr %s15, 8
      %s17 = scalar_lea.vmem %s0, %s16
      %s18 = sadd.s32 0, 0
      %p19 = scmp.lt.s32.totalorder %s18, 0
      %s20 = scalar_select %p19, %s18, 0
      %s21 = smul.u32 2, %s20
    $region5: #{tpu_custom_call.1} parent=1 // pred_fallthru
      _
    // Predicated region
    $region6: #{tpu_custom_call.1} parent=1 // pred_check
      _
    $region7: #{tpu_custom_call.1} parent=1 // pred_check_branch
      %23 = sbr.rel (0) target = $region9
    $region8: #{tpu_custom_call.1} parent=1 // pred_region
      %s24 = sadd.s32 0, 0
      %p25 = scmp.lt.s32.totalorder %s24, 0
      %s26 = scalar_select %p25, %s24, 0
      %s27 = smul.u32 2, %s26
      %p28 = scmp.lt.s32.totalorder %s27, 1
      %s29 = scalar_select %p28, %s27, 1
      %s30 = smul.addr %s29, 8
      %s31 = scalar_lea.vmem %s1, %s30
      %s32 = sadd.s32 0, 0
      %p33 = scmp.lt.s32.totalorder %s32, 0
      %s34 = scalar_select %p33, %s32, 0
      %s35 = smul.u32 2, %s34
    $region9: #{tpu_custom_call.1} parent=1 // pred_fallthru
      _
    %s36 = sadd.s32 0, 0
    %p37 = scmp.lt.s32.totalorder %s36, 0
    %s38 = scalar_select %p37, %s36, 0
    %s39 = smul.u32 2, %s38
    %p40 = scmp.lt.s32.totalorder %s39, 1
    %s41 = scalar_select %p40, %s39, 1
    %s42 = smul.addr %s41, 8
    %s43 = scalar_lea.vmem %s0, %s42
    %s44 = sadd.s32 0, 0
    %p45 = scmp.lt.s32.totalorder %s44, 0
    %s46 = scalar_select %p45, %s44, 0
    %s47 = smul.u32 2, %s46
    %p48 = scmp.lt.s32.totalorder %s47, 1
    %s49 = scalar_select %p48, %s47, 1
    %s50 = smul.addr %s49, 8
    %s51 = scalar_lea.vmem %s1, %s50
    %s52 = sadd.s32 0, 0
    %p53 = scmp.lt.s32.totalorder %s52, 0
    %s54 = scalar_select %p53, %s52, 0
    %s55 = smul.u32 2, %s54
    %p56 = scmp.lt.s32.totalorder %s55, 1
    %s57 = scalar_select %p56, %s55, 1
    %s58 = smul.addr %s57, 8
    %s59 = scalar_lea.vmem %s0, %s58
    %s60 = sadd.s32 0, 0
    %p61 = scmp.lt.s32.totalorder %s60, 0
    %s62 = scalar_select %p61, %s60, 0
    %s63 = smul.u32 2, %s62
    %s64 = sadd.s32 0, 0
    %p65 = scmp.lt.s32.totalorder %s64, 0
    %s66 = scalar_select %p65, %s64, 0
    %s67 = smul.u32 2, %s66
    %p68 = scmp.lt.s32.totalorder %s67, 1
    %s69 = scalar_select %p68, %s67, 1
    %s70 = smul.addr %s69, 8
    %s71 = scalar_lea.vmem %s1, %s70
    %s72 = sadd.s32 0, 0
    %p73 = scmp.lt.s32.totalorder %s72, 0
    %s74 = scalar_select %p73, %s72, 0
    %s75 = smul.u32 2, %s74
    %p76 = scmp.eq.s32.totalorder 0, 0
    // Predicated region
    $region10: #{tpu_custom_call.1} parent=1 // pred_check
      %p77 = pneg %p76
    $region11: #{tpu_custom_call.1} parent=1 // pred_check_branch
      %79 = sbr.rel (%p77) target = $region13
    $region12: #{tpu_custom_call.1} parent=1 // pred_region
      %vm80 = vcmask 7168
      %81 = vst.msk [vmem:[#allocation2] sm:$0xff] %vm80, 0.0
      %82 = vst.msk [vmem:[#allocation2 + $0x8] sm:$0xff] %vm80, 0.0
    $region13: #{tpu_custom_call.1} parent=1 // pred_fallthru
      _
    %v83 = vld [vmem:[%s59] sm:$0xff]
    %v84 = vld [vmem:[%s59 + $0x8] sm:$0xff]
    %v85 = vld [vmem:[%s71] sm:$0xff]
    %v86 = vld [vmem:[%s71 + $0x8] sm:$0xff]
    %v87 = vlaneseq
    %v88 = vand.u32 %v87, 127
    %vm89 = vcmask 261120
    %v90 = vsel %vm89, %v83, -inf
    %91 = vmax.xlane.f32.xlu0 %v90
    %v92 = vpop.xlane.xlu0 %91
    %v93 = vsel %vm89, %v84, -inf
    %94 = vmax.xlane.f32.xlu0 %v93
    %v95 = vpop.xlane.xlu0 %94
    %96 = vset.pattern.permute.xlu0 0
    %97 = vperm.xlu0 %96, %v85
    %v98 = vpop.permute.xlu0 %97
    %99 = vset.pattern.permute.xlu0 0
    %100 = vperm.xlu0 %99, %v86
    %v101 = vpop.permute.xlu0 %100
    %vm102 = vcmp.eq.s32.totalorder %v88, %v98
    %vm103 = vcmp.eq.s32.totalorder %v88, %v101
    %v104 = vsel %vm102, %v83, 0.0
    %v105 = vsel %vm103, %v84, 0.0
    %v106 = vsub.f32 %v83, %v92
    %v107 = vsub.f32 %v84, %v95
    %v108 = vmul.f32 %v106, 1.442695
    %v109 = vpow.pop %v108
    %v110 = vmul.f32 %v107, 1.442695
    %v111 = vpow.pop %v110
    %v112 = vsel %vm89, %v104, 0.0
    %113 = vadd.xlane.f32.xlu0 %v112
    %v114 = vpop.xlane.xlu0 %113
    %v115 = vsel %vm89, %v105, 0.0
    %116 = vadd.xlane.f32.xlu0 %v115
    %v117 = vpop.xlane.xlu0 %116
    %v118 = vsel %vm89, %v109, 0.0
    %119 = vadd.xlane.f32.xlu0 %v118
    %v120 = vpop.xlane.xlu0 %119
    %v121 = vsel %vm89, %v111, 0.0
    %122 = vadd.xlane.f32.xlu0 %v121
    %v123 = vpop.xlane.xlu0 %122
    %v124 = vlog2.pop %v120
    %v125 = vmul.f32 %v124, 0.6931472
    %v126 = vlog2.pop %v123
    %v127 = vmul.f32 %v126, 0.6931472
    %v128 = vadd.f32 %v92, %v125
    %v129 = vadd.f32 %v95, %v127
    %v130 = vsub.f32 %v128, %v114
    %v131 = vsub.f32 %v129, %v117
    %s132 = sadd.s32 0, 0
    %s133 = smul.u32 %s132, 16
    %v134 = vlaneseq
    %v135 = vshrl.u32 %v134, 7
    %v136 = vadd.s32 %v135, 8
    %v137 = vstv %s133
    %v138 = vadd.s32 %v137, %v135
    %v139 = vadd.s32 %v137, %v136
    %vm140 = vcmp.lt.s32.totalorder %v138, 16
    %vm141 = vcmp.lt.s32.totalorder %v139, 16
    %v142 = vsel %vm140, %v130, 0.0
    %v143 = vsel %vm141, %v131, 0.0
    %v144 = vld [vmem:[#allocation2] sm:$0xff]
    %v145 = vld [vmem:[#allocation2 + $0x8] sm:$0xff]
    %v146 = vadd.f32 %v144, %v142
    %v147 = vadd.f32 %v145, %v143
    %vm148 = vcmask 7168
    %149 = vst.msk [vmem:[#allocation2] sm:$0xff] %vm148, %v146
    %150 = vst.msk [vmem:[#allocation2 + $0x8] sm:$0xff] %vm148, %v147
    // Predicated region
    $region14: #{tpu_custom_call.1} parent=1 // pred_check
      %p151 = pneg %p76
    $region15: #{tpu_custom_call.1} parent=1 // pred_check_branch
      %153 = sbr.rel (%p151) target = $region17
    $region16: #{tpu_custom_call.1} parent=1 // pred_region
      %v154 = vld [vmem:[#allocation2] sm:$0xff]
      %v155 = vld [vmem:[#allocation2 + $0x8] sm:$0xff]
      %v156 = vsel %vm148, %v154, 0.0
      %v157 = vsel %vm148, %v155, 0.0
      %v158 = vadd.f32 %v156, %v157
      %159 = vadd.xlane.f32.xlu0 %v158
      %v160 = vpop.xlane.xlu0 %159
      %v161 = vrot.slane %v160, 4
      %v162 = vadd.f32 %v160, %v161
      %v163 = vrot.slane %v162, 2
      %v164 = vadd.f32 %v162, %v163
      %v165 = vrot.slane %v164, 1
      %v166 = vadd.f32 %v164, %v165
      %s167 = vtos %v166
      %v168 = vstv %s167
      %169 = vst [vmem:[#allocation3] sm:$0xff] %v168
    $region17: #{tpu_custom_call.1} parent=1 // pred_fallthru
      _
    // Predicated region
    $region18: #{tpu_custom_call.1} parent=1 // pred_check
      _
    $region19: #{tpu_custom_call.1} parent=1 // pred_check_branch
      %171 = sbr.rel (0) target = $region21
    $region20: #{tpu_custom_call.1} parent=1 // pred_region
      %173 = vsyncadd [#allocation4], 0
      %s175 = sshll.u32 [#allocation3], 4
      %s176 = int_to_ptr.vmem [resolvable:$true] %s175
      %s177 = sshll.u32 %s2, 4
      %s178 = int_to_ptr.hbm [resolvable:$true] %s177
      %180 = dma.vmem_to_hbm [thread:$0]  %s176, 128, %s178, [#allocation4]
    $region21: #{tpu_custom_call.1} parent=1 // pred_fallthru
      _
    // Predicated region
    $region22: #{tpu_custom_call.1} parent=1 // pred_check
      _
    $region23: #{tpu_custom_call.1} parent=1 // pred_check_branch
      %182 = sbr.rel (0) target = $region25
    $region24: #{tpu_custom_call.1} parent=1 // pred_region
      %184 = dma.done [#allocation4], 128
    $region25: #{tpu_custom_call.1} parent=1 // pred_fallthru
      _
    %185 = vsyncpa [#allocation4], 1

</llo_original>
